<compile_context>
chip_gen: v7x
topology: tpu7x:2x2x1
jax: 0.10.0
libtpu: 0.0.40
codegen_flags: <defaults>
</compile_context>

<pallas_src>
import functools

import jax
import jax.numpy as jnp
from jax.experimental import pallas as pl
from jax.experimental.pallas import tpu as pltpu


# --------------------------------------------------------------------------- #
# Kernels (NCHW layout: channels on sublanes, spatial on lanes)
# --------------------------------------------------------------------------- #
def _se_fused_kernel(x_ref, w1_ref, w2t_ref, o_ref, *, inv_hw):
    """Single-pass SE on one (bb, C, HW) tile: pool + excite + rescale."""
    x = x_ref[...]                                                  # (bb, C, HW)

    # Squeeze: global average pool, f32 accumulation without a cast copy.
    mean = jnp.sum(x, axis=-1, dtype=jnp.float32) * inv_hw          # (bb, C)

    # Excite FC1 (+ReLU): one batched MXU pass over the whole batch block.
    h = jnp.maximum(
        jnp.dot(mean, w1_ref[...], preferred_element_type=jnp.float32), 0.0
    )                                                               # (bb, hidden)

    # Excite FC2 + sigmoid, elementwise with a keepdims lane reduction so the
    # gate is produced directly with channels on sublanes (bb, C, 1) -- no
    # lane->sublane relayout needed before the rescale broadcast.
    prod = h[:, None, :] * w2t_ref[...][None, :, :]                 # (bb, C, hidden)
    y = jax.nn.sigmoid(jnp.sum(prod, axis=-1, keepdims=True))       # (bb, C, 1)

    # Scale: per-channel gate broadcasts along the lane (spatial) axis.
    o_ref[...] = (x * y.astype(x.dtype)).astype(o_ref.dtype)


def _se_pool_kernel(x_ref, w1_ref, w2t_ref, g_ref, acc_ref, *, inv_hw):
    """Pass 1 (spatially tiled): accumulate the pool, finalize gate on last tile."""
    j = pl.program_id(1)

    @pl.when(j == 0)
    def _():
        acc_ref[...] = jnp.zeros_like(acc_ref)

    acc_ref[...] += jnp.sum(x_ref[...], axis=-1, dtype=jnp.float32)  # (bb, C)

    @pl.when(j == pl.num_programs(1) - 1)
    def _():
        mean = acc_ref[...] * inv_hw                                 # (bb, C)
        h = jnp.maximum(
            jnp.dot(mean, w1_ref[...], preferred_element_type=jnp.float32), 0.0
        )                                                            # (bb, hidden)
        prod = h[:, None, :] * w2t_ref[...][None, :, :]              # (bb, C, hidden)
        y = jax.nn.sigmoid(jnp.sum(prod, axis=-1, keepdims=True))    # (bb, C, 1)
        g_ref[...] = y.astype(g_ref.dtype)


def _se_scale_kernel(x_ref, g_ref, o_ref):
    """Pass 2 (spatially tiled): rescale one (bb, C, hw_t) tile by the gate."""
    gate = g_ref[...].astype(x_ref.dtype)                            # (bb, C, 1)
    o_ref[...] = (x_ref[...] * gate).astype(o_ref.dtype)


# --------------------------------------------------------------------------- #
# Tiling helpers
# --------------------------------------------------------------------------- #
def _pick_batch_block(batch, bytes_per_sample_tile, budget):
    """Largest divisor of `batch` whose tile fits `budget`, preferring a grid
    of >= 2 steps (software pipelining / v7x dual-TC) and bb a multiple of 8
    (non-degenerate sublane extent for the batched FCs)."""
    divisors = [d for d in range(1, batch + 1) if batch % d == 0]
    fitting = [d for d in divisors if d * bytes_per_sample_tile <= budget] or [1]
    pipelined = [d for d in fitting if batch // d >= 2] or fitting
    mult8 = [d for d in pipelined if d % 8 == 0] or pipelined
    return max(mult8)


def _compiler_params(dim_semantics, tile_bytes):
    # Double-buffered input + output tiles plus headroom for weights/scratch.
    vmem_limit = int(min(64 << 20, max(8 << 20, 4 * tile_bytes + (2 << 20))))
    return pltpu.CompilerParams(
        dimension_semantics=dim_semantics, vmem_limit_bytes=vmem_limit
    )


# --------------------------------------------------------------------------- #
# Wrappers
# --------------------------------------------------------------------------- #
def _se_fused(x3, w1, w2t, batch_block, budget, inv_hw):
    B, C, HW = x3.shape
    hidden = w1.shape[1]
    itemsize = jnp.dtype(x3.dtype).itemsize
    bb = batch_block or _pick_batch_block(B, C * HW * itemsize, budget)
    assert B % bb == 0
    tile_bytes = bb * C * HW * itemsize
    weight_bytes = 2 * C * hidden * jnp.dtype(w1.dtype).itemsize

    cost = pl.CostEstimate(
        flops=int(2 * B * C * HW + 4 * B * C * hidden),
        transcendentals=int(B * C),
        bytes_accessed=int(2 * B * C * HW * itemsize + weight_bytes),
    )
    return pl.pallas_call(
        functools.partial(_se_fused_kernel, inv_hw=inv_hw),
        out_shape=jax.ShapeDtypeStruct((B, C, HW), x3.dtype),
        grid_spec=pltpu.PrefetchScalarGridSpec(
            num_scalar_prefetch=0,
            grid=(B // bb,),
            in_specs=[
                pl.BlockSpec((bb, C, HW), lambda b: (b, 0, 0)),
                pl.BlockSpec((C, hidden), lambda b: (0, 0)),
                pl.BlockSpec((C, hidden), lambda b: (0, 0)),
            ],
            out_specs=pl.BlockSpec((bb, C, HW), lambda b: (b, 0, 0)),
        ),
        compiler_params=_compiler_params(("parallel",), tile_bytes),
        cost_estimate=cost,
    )(x3, w1, w2t)


def _se_two_pass(x3, w1, w2t, hw_t, batch_block, budget, inv_hw):
    B, C, HW = x3.shape
    hidden = w1.shape[1]
    itemsize = jnp.dtype(x3.dtype).itemsize
    bb = batch_block or _pick_batch_block(B, C * hw_t * itemsize, budget)
    assert B % bb == 0 and HW % hw_t == 0
    n_hw = HW // hw_t
    tile_bytes = bb * C * hw_t * itemsize
    weight_bytes = 2 * C * hidden * jnp.dtype(w1.dtype).itemsize
    gate_bytes = B * C * 4

    # Pass 1: pool + excite -> per-sample gate (B, C, 1), f32.
    pool_cost = pl.CostEstimate(
        flops=int(B * C * HW + 4 * B * C * hidden),
        transcendentals=int(B * C),
        bytes_accessed=int(B * C * HW * itemsize + weight_bytes + gate_bytes),
    )
    gate = pl.pallas_call(
        functools.partial(_se_pool_kernel, inv_hw=inv_hw),
        out_shape=jax.ShapeDtypeStruct((B, C, 1), jnp.float32),
        grid_spec=pltpu.PrefetchScalarGridSpec(
            num_scalar_prefetch=0,
            grid=(B // bb, n_hw),
            in_specs=[
                pl.BlockSpec((bb, C, hw_t), lambda b, j: (b, 0, j)),
                pl.BlockSpec((C, hidden), lambda b, j: (0, 0)),
                pl.BlockSpec((C, hidden), lambda b, j: (0, 0)),
            ],
            out_specs=pl.BlockSpec((bb, C, 1), lambda b, j: (b, 0, 0)),
            scratch_shapes=[pltpu.VMEM((bb, C), jnp.float32)],
        ),
        compiler_params=_compiler_params(("parallel", "arbitrary"), tile_bytes),
        cost_estimate=pool_cost,
    )(x3, w1, w2t)

    # Pass 2: rescale.
    scale_cost = pl.CostEstimate(
        flops=int(B * C * HW),
        transcendentals=0,
        bytes_accessed=int(2 * B * C * HW * itemsize + gate_bytes),
    )
    return pl.pallas_call(
        _se_scale_kernel,
        out_shape=jax.ShapeDtypeStruct((B, C, HW), x3.dtype),
        grid_spec=pltpu.PrefetchScalarGridSpec(
            num_scalar_prefetch=0,
            grid=(B // bb, n_hw),
            in_specs=[
                pl.BlockSpec((bb, C, hw_t), lambda b, j: (b, 0, j)),
                pl.BlockSpec((bb, C, 1), lambda b, j: (b, 0, 0)),
            ],
            out_specs=pl.BlockSpec((bb, C, hw_t), lambda b, j: (b, 0, j)),
        ),
        compiler_params=_compiler_params(("parallel", "parallel"), tile_bytes),
        cost_estimate=scale_cost,
    )(x3, gate)


def se_layer(x, w1, w2, *, batch_block=None, spatial_block=None,
             tile_budget_bytes=2 << 20):
    """SE forward.  x: (B, C, H, W); w1: (C, C//r); w2: (C//r, C) -> (B, C, H, W)."""
    B, C, H, W = x.shape
    HW = H * W
    itemsize = jnp.dtype(x.dtype).itemsize
    inv_hw = 1.0 / HW

    # NCHW stays; (B, C, H, W) -> (B, C, HW) is a free contiguous view.
    x3 = x.reshape(B, C, HW)
    # Tiny weight transpose (C//r x C), negligible; lets FC2 be evaluated
    # elementwise with the contraction on lanes inside the kernel.
    w2t = jnp.transpose(w2)                                          # (C, C//r)

    # Spatial tile choice: fused single pass when one sample's slab fits the
    # budget, otherwise 128-aligned spatial tiles with the two-pass pipeline.
    if spatial_block is not None:
        hw_t = spatial_block
        assert HW % hw_t == 0 and (hw_t == HW or hw_t % 128 == 0)
    elif C * HW * itemsize > tile_budget_bytes and HW % 128 == 0:
        hw_t = 128
        for cand in range(256, HW, 128):
            if HW % cand == 0 and C * cand * itemsize <= tile_budget_bytes:
                hw_t = cand
    else:
        hw_t = HW

    if hw_t == HW:
        out3 = _se_fused(x3, w1, w2t, batch_block, tile_budget_bytes, inv_hw)
    else:
        out3 = _se_two_pass(x3, w1, w2t, hw_t, batch_block, tile_budget_bytes,
                            inv_hw)
    return out3.reshape(B, C, H, W)


def se_layer_ref(x, w1, w2):
    """Pure-JAX reference mirroring the PyTorch SELayer forward."""
    y = jnp.mean(x, axis=(2, 3))                  # AdaptiveAvgPool2d(1)
    y = jnp.maximum(y @ w1, 0.0)                  # Linear(C, C//r, bias=False) + ReLU
    y = jax.nn.sigmoid(y @ w2)                    # Linear(C//r, C, bias=False) + Sigmoid
    return x * y[:, :, None, None]


# --------------------------------------------------------------------------- #
# Self-test
# --------------------------------------------------------------------------- #
if __name__ == "__main__":
    def make_inputs(seed, B, C, H, W, reduction):
        hidden = max(1, C // reduction)
        kx, k1, k2 = jax.random.split(jax.random.PRNGKey(seed), 3)
        x = jax.random.normal(kx, (B, C, H, W), dtype=jnp.float32)
        # nn.Linear default init, weights pre-transposed to (in, out).
        b1 = 1.0 / (C ** 0.5)
        b2 = 1.0 / (hidden ** 0.5)
        w1 = jax.random.uniform(k1, (C, hidden), jnp.float32, -b1, b1)
        w2 = jax.random.uniform(k2, (hidden, C), jnp.float32, -b2, b2)
        return x, w1, w2

    # Config 1: module's toy config (channel=64, reduction=16) -> fused path,
    # batch-tiled grid of 2 steps.
    x, w1, w2 = make_inputs(0, 2, 64, 8, 8, 16)
    out = jax.block_until_ready(se_layer(x, w1, w2))
    ref = se_layer_ref(x, w1, w2)
    assert out.shape == x.shape
    assert jnp.allclose(out, ref, atol=1e-5, rtol=1e-5), "fused path mismatch"

    # Config 2: larger spatial extent with forced spatial tiling -> exercises
    # the two-pass (pool-accumulate + rescale) fallback.
    x2, w1b, w2b = make_inputs(1, 2, 64, 16, 16, 16)
    out2 = jax.block_until_ready(se_layer(x2, w1b, w2b, spatial_block=128))
    ref2 = se_layer_ref(x2, w1b, w2b)
    assert out2.shape == x2.shape
    assert jnp.allclose(out2, ref2, atol=1e-5, rtol=1e-5), "tiled path mismatch"

    print("KERNEL_OK")
</pallas_src>

<mosaic_0001>
module attributes {stable_mosaic.version = 11 : i64} {
  func.func @_se_fused_kernel(%arg0: i32, %arg1: memref<1x64x64xf32, #tpu.memory_space<vmem>>, %arg2: memref<64x4xf32, #tpu.memory_space<vmem>>, %arg3: memref<64x4xf32, #tpu.memory_space<vmem>>, %arg4: memref<1x64x64xf32, #tpu.memory_space<vmem>>) attributes {dimension_semantics = [#tpu.dimension_semantics<parallel>], iteration_bounds = array<i64: 2>, scalar_prefetch = 0 : i64, scratch_operands = 0 : i64, tpu.core_type = #tpu.core_type<tc>, window_params = [{transform_indices = @transform_0, window_bounds = array<i64: 1, 64, 64>}, {pipeline_mode = #tpu.pipeline_mode<synchronous>, transform_indices = @transform_1, window_bounds = array<i64: 64, 4>}, {pipeline_mode = #tpu.pipeline_mode<synchronous>, transform_indices = @transform_2, window_bounds = array<i64: 64, 4>}, {transform_indices = @transform_3, window_bounds = array<i64: 1, 64, 64>}]} {
    %c0 = arith.constant 0 : index
    %c0_0 = arith.constant 0 : index
    %c0_1 = arith.constant 0 : index
    %0 = vector.load %arg1[%c0, %c0_0, %c0_1] : memref<1x64x64xf32, #tpu.memory_space<vmem>>, vector<1x64x64xf32>
    %cst = arith.constant dense<0.000000e+00> : vector<1x64xf32>
    %1 = vector.multi_reduction <add>, %0, %cst [2] : vector<1x64x64xf32> to vector<1x64xf32>
    %cst_2 = arith.constant 1.562500e-02 : f32
    %2 = vector.broadcast %cst_2 : f32 to vector<1x64xf32>
    %3 = arith.mulf %1, %2 : vector<1x64xf32>
    %c0_3 = arith.constant 0 : index
    %c0_4 = arith.constant 0 : index
    %4 = vector.load %arg2[%c0_3, %c0_4] : memref<64x4xf32, #tpu.memory_space<vmem>>, vector<64x4xf32>
    %cst_5 = arith.constant dense<0.000000e+00> : vector<1x4xf32>
    %5 = tpu.matmul %3, %4, %cst_5 {dimension_numbers = #tpu.dot_dimension_numbers<[1], [0], [0], [1], [0, 0, 1, 1], [], []>} : vector<1x64xf32>, vector<64x4xf32>, vector<1x4xf32> -> vector<1x4xf32>
    %cst_6 = arith.constant 0.000000e+00 : f32
    %6 = vector.broadcast %cst_6 : f32 to vector<1x4xf32>
    %7 = arith.maximumf %5, %6 : vector<1x4xf32>
    %8 = vector.shape_cast %7 : vector<1x4xf32> to vector<1x1x4xf32>
    %c0_7 = arith.constant 0 : index
    %c0_8 = arith.constant 0 : index
    %9 = vector.load %arg3[%c0_7, %c0_8] : memref<64x4xf32, #tpu.memory_space<vmem>>, vector<64x4xf32>
    %10 = vector.shape_cast %9 : vector<64x4xf32> to vector<1x64x4xf32>
    %11 = vector.broadcast %8 : vector<1x1x4xf32> to vector<1x64x4xf32>
    %12 = arith.mulf %11, %10 : vector<1x64x4xf32>
    %cst_9 = arith.constant dense<0.000000e+00> : vector<1x64xf32>
    %13 = vector.multi_reduction <add>, %12, %cst_9 [2] : vector<1x64x4xf32> to vector<1x64xf32>
    %14 = vector.shape_cast %13 : vector<1x64xf32> to vector<1x64x1xf32>
    %15 = arith.negf %14 : vector<1x64x1xf32>
    %16 = math.exp %15 : vector<1x64x1xf32>
    %cst_10 = arith.constant 1.000000e+00 : f32
    %17 = vector.broadcast %cst_10 : f32 to vector<1x64x1xf32>
    %18 = arith.addf %17, %16 : vector<1x64x1xf32>
    %19 = arith.divf %17, %18 : vector<1x64x1xf32>
    %20 = vector.broadcast %19 : vector<1x64x1xf32> to vector<1x64x64xf32>
    %21 = arith.mulf %0, %20 : vector<1x64x64xf32>
    %c0_11 = arith.constant 0 : index
    %c0_12 = arith.constant 0 : index
    %c0_13 = arith.constant 0 : index
    %22 = vector.load %arg4[%c0_11, %c0_12, %c0_13] : memref<1x64x64xf32, #tpu.memory_space<vmem>>, vector<1x64x64xf32>
    tpu.vector_store %arg4[%c0_11, %c0_12, %c0_13], %21 {strides = array<i32>} : memref<1x64x64xf32, #tpu.memory_space<vmem>>, vector<1x64x64xf32>,
    return
  }
  func.func @transform_0(%arg0: i32) -> (i32, i32, i32) {
    %c0_i32 = arith.constant 0 : i32
    %c0_i32_0 = arith.constant 0 : i32
    %c0_i32_1 = arith.constant 0 : i32
    return %arg0, %c0_i32, %c0_i32_0 : i32, i32, i32
  }
  func.func @transform_1(%arg0: i32) -> (i32, i32) {
    %c0_i32 = arith.constant 0 : i32
    %c0_i32_0 = arith.constant 0 : i32
    %c0_i32_1 = arith.constant 0 : i32
    return %c0_i32, %c0_i32_0 : i32, i32
  }
  func.func @transform_2(%arg0: i32) -> (i32, i32) {
    %c0_i32 = arith.constant 0 : i32
    %c0_i32_0 = arith.constant 0 : i32
    %c0_i32_1 = arith.constant 0 : i32
    return %c0_i32, %c0_i32_0 : i32, i32
  }
  func.func @transform_3(%arg0: i32) -> (i32, i32, i32) {
    %c0_i32 = arith.constant 0 : i32
    %c0_i32_0 = arith.constant 0 : i32
    %c0_i32_1 = arith.constant 0 : i32
    return %arg0, %c0_i32, %c0_i32_0 : i32, i32, i32
  }
}

</mosaic_0001>

<llo_original>
// kernel: tpu_custom_call.1
$region0: #{tpu_custom_call.1}
  #allocation0 [shape = 'u32[]', space=smem, size = 0x4, offset = 0x4, fixed_abs, tag = 'smem constant byte address 0x4 - core index']
  #allocation1 [shape = 'u32[144,128]{1,0:T(1,128)}', space=vmem, size = 0x12000, scoped, tag = 'internal scratch']
  %s0 = inlined_call_operand.vmem [shape: f32[2,64,64], index: 0, kind: input, shape index: {}]
  %s1 = inlined_call_operand.vmem [shape: f32[64,4], index: 1, kind: input, shape index: {}]
  %s2 = inlined_call_operand.vmem [shape: f32[64,4], index: 2, kind: input, shape index: {}]
  %s3 = inlined_call_operand.hbm [shape: f32[2,64,64], index: 3, kind: output, shape index: {}]
  %s4 = sld [smem:[#allocation0]]
  $region45: #{tpu_custom_call.1} parent=0
    _
  %s6 = ssub.s32 1, %s4
  %s7 = scalar_select 0, %s6, %s4
  $region1: #{tpu_custom_call.1} parent=0
    #allocation2 [shape = 'u8[65536]{0}', space=vmem, size = 0x10000, scoped, tag = 'output window, operand 0']
    #allocation3 [shape = 's32[2]{0}', space=sflag, size = 0x8, scoped, tag = 'scoped memory for tpu_custom_call.1']
    %8 = vsyncpa [#allocation3], 0
    %s9 = scalar_lea.sflag [#allocation3], 1
    %10 = vsyncpa %s9, 0
    loop: start=0, step=1, limit=4
    $region2: #{tpu_custom_call.1} parent=1 // loop_pre_header
      _
    $region3: #{tpu_custom_call.1} parent=1 // loop_header
      %s12 = sphi 0, %s16
      %p13 = scmp.ge.s32.totalorder %s12, 4
      %s22 = sphi 0, %s24
      %s25 = sphi 0, %s22
      %s26 = sphi 0, %s25
      %s42 = sphi 0, %s26
      %s46 = sphi 0, %s46
      %s48 = sphi 0, %s46
      %s49 = sphi 0, %s48
      %s63 = sphi 0, %s49
      %s67 = sphi 0, %s67
      %s69 = sphi 0, %s67
      %s70 = sphi 0, %s69
      %s84 = sphi 0, %s70
      %s90 = sphi 0, %s92
      %s93 = sphi 0, %s90
      %s94 = sphi 0, %s93
      %s110 = sphi 0, %s94
    $region4: #{tpu_custom_call.1} parent=1 // loop_header_branch
      %15 = sbr.rel (%p13) target = $region8
    $region5: #{tpu_custom_call.1} parent=1 // loop_body
      %s17 = ssub.s32 %s12, 1
      %s18 = ssub.s32 %s12, 2
      %s19 = sadd.s32 %s12, 1
      %s20 = ssub.s32 %s12, %s19
      %p21 = scmp.eq.s32.totalorder %s20, 0
      %s23 = sadd.s32 %s22, 1
      %s24 = scalar_select %p21, %s22, %s23
      %p27 = pneg %p21
      %p28 = scmp.eq.s32.totalorder %s12, 1
      %p29 = por %p27, %p28
      %p30 = scmp.ne.s32.totalorder %s22, %s25
      %p31 = scmp.eq.s32.totalorder %s12, 0
      %p32 = por %p30, %p31
      %p33 = scmp.ne.s32.totalorder %s22, %s25
      %p34 = scmp.eq.s32.totalorder %s17, 1
      %p35 = por %p33, %p34
      %p36 = scmp.ne.s32.totalorder %s25, %s26
      %p37 = scmp.eq.s32.totalorder %s17, 0
      %p38 = por %p36, %p37
      %p39 = scmp.ne.s32.totalorder %s25, %s26
      %p40 = scmp.eq.s32.totalorder %s18, 1
      %p41 = por %p39, %p40
      %p43 = scmp.ne.s32.totalorder %s26, %s42
      %p44 = scmp.eq.s32.totalorder %s18, 0
      %p45 = por %p43, %p44
      %s47 = sadd.s32 %s46, 1
      %p50 = scmp.eq.s32.totalorder %s12, 1
      %p51 = scmp.ne.s32.totalorder %s46, %s48
      %p52 = scmp.eq.s32.totalorder %s12, 0
      %p53 = por %p51, %p52
      %p54 = scmp.ne.s32.totalorder %s46, %s48
      %p55 = scmp.eq.s32.totalorder %s17, 1
      %p56 = por %p54, %p55
      %p57 = scmp.ne.s32.totalorder %s48, %s49
      %p58 = scmp.eq.s32.totalorder %s17, 0
      %p59 = por %p57, %p58
      %p60 = scmp.ne.s32.totalorder %s48, %s49
      %p61 = scmp.eq.s32.totalorder %s18, 1
      %p62 = por %p60, %p61
      %p64 = scmp.ne.s32.totalorder %s49, %s63
      %p65 = scmp.eq.s32.totalorder %s18, 0
      %p66 = por %p64, %p65
      %s68 = sadd.s32 %s67, 1
      %p71 = scmp.eq.s32.totalorder %s12, 1
      %p72 = scmp.ne.s32.totalorder %s67, %s69
      %p73 = scmp.eq.s32.totalorder %s12, 0
      %p74 = por %p72, %p73
      %p75 = scmp.ne.s32.totalorder %s67, %s69
      %p76 = scmp.eq.s32.totalorder %s17, 1
      %p77 = por %p75, %p76
      %p78 = scmp.ne.s32.totalorder %s69, %s70
      %p79 = scmp.eq.s32.totalorder %s17, 0
      %p80 = por %p78, %p79
      %p81 = scmp.ne.s32.totalorder %s69, %s70
      %p82 = scmp.eq.s32.totalorder %s18, 1
      %p83 = por %p81, %p82
      %p85 = scmp.ne.s32.totalorder %s70, %s84
      %p86 = scmp.eq.s32.totalorder %s18, 0
      %p87 = por %p85, %p86
      %s88 = ssub.s32 %s12, %s19
      %p89 = scmp.eq.s32.totalorder %s88, 0
      %s91 = sadd.s32 %s90, 1
      %s92 = scalar_select %p89, %s90, %s91
      %p95 = pneg %p89
      %p96 = scmp.eq.s32.totalorder %s12, 1
      %p97 = por %p95, %p96
      %p98 = scmp.ne.s32.totalorder %s90, %s93
      %p99 = scmp.eq.s32.totalorder %s12, 0
      %p100 = por %p98, %p99
      %p101 = scmp.ne.s32.totalorder %s90, %s93
      %p102 = scmp.eq.s32.totalorder %s17, 1
      %p103 = por %p101, %p102
      %p104 = scmp.ne.s32.totalorder %s93, %s94
      %p105 = scmp.eq.s32.totalorder %s17, 0
      %p106 = por %p104, %p105
      %p107 = scmp.ne.s32.totalorder %s93, %s94
      %p108 = scmp.eq.s32.totalorder %s18, 1
      %p109 = por %p107, %p108
      %p111 = scmp.ne.s32.totalorder %s94, %s110
      %p112 = scmp.eq.s32.totalorder %s18, 0
      %p113 = por %p111, %p112
      %p114 = scmp.le.s32.totalorder 1, %s12
      %p115 = scmp.lt.s32.totalorder %s12, 3
      %p116 = pnand %p114, %p115
      %p117 = pneg %p116
      // Predicated region
      $region9: #{tpu_custom_call.1} parent=5 // pred_check
        _
      $region10: #{tpu_custom_call.1} parent=5 // pred_check_branch
        %119 = sbr.rel (%p116) target = $region12
      $region11: #{tpu_custom_call.1} parent=5 // pred_region
        %s120 = ssub.s32 %s12, 1
        // Predicated region
        $region13: #{tpu_custom_call.1} parent=11 // pred_check
          %p121 = pneg %p59
        $region14: #{tpu_custom_call.1} parent=11 // pred_check_branch
          %123 = sbr.rel (%p121) target = $region16
        $region15: #{tpu_custom_call.1} parent=11 // pred_region
          _
        $region16: #{tpu_custom_call.1} parent=11 // pred_fallthru
          _
        // Predicated region
        $region17: #{tpu_custom_call.1} parent=11 // pred_check
          %p124 = pneg %p80
        $region18: #{tpu_custom_call.1} parent=11 // pred_check_branch
          %126 = sbr.rel (%p124) target = $region20
        $region19: #{tpu_custom_call.1} parent=11 // pred_region
          _
        $region20: #{tpu_custom_call.1} parent=11 // pred_fallthru
          _
      $region12: #{tpu_custom_call.1} parent=5 // pred_fallthru
        _
      %p127 = scmp.lt.s32.totalorder %s12, 2
      // Predicated region
      $region21: #{tpu_custom_call.1} parent=5 // pred_check
        %p128 = pneg %p127
      $region22: #{tpu_custom_call.1} parent=5 // pred_check_branch
        %130 = sbr.rel (%p128) target = $region24
      $region23: #{tpu_custom_call.1} parent=5 // pred_region
        // Predicated region
        $region25: #{tpu_custom_call.1} parent=23 // pred_check
          %p131 = pneg %p32
        $region26: #{tpu_custom_call.1} parent=23 // pred_check_branch
          %133 = sbr.rel (%p131) target = $region28
        $region27: #{tpu_custom_call.1} parent=23 // pred_region
          %p134 = scmp.lt.s32.totalorder %s12, 1
          %s135 = scalar_select %p134, %s12, 1
          %s136 = smul.addr %s135, 8
          %s137 = smul.addr %s136, 8
          %s138 = scalar_lea.vmem %s0, %s137
        $region28: #{tpu_custom_call.1} parent=23 // pred_fallthru
          _
      $region24: #{tpu_custom_call.1} parent=5 // pred_fallthru
        _
      %p139 = scmp.le.s32.totalorder 1, %s12
      %p140 = scmp.lt.s32.totalorder %s12, 3
      %p141 = pnand %p139, %p140
      %p142 = pneg %p141
      // Predicated region
      $region29: #{tpu_custom_call.1} parent=5 // pred_check
        _
      $region30: #{tpu_custom_call.1} parent=5 // pred_check_branch
        %144 = sbr.rel (%p141) target = $region32
      $region31: #{tpu_custom_call.1} parent=5 // pred_region
        %s145 = ssub.s32 %s12, 1
        %p146 = scmp.lt.s32.totalorder %s17, 1
        %s147 = scalar_select %p146, %s17, 1
        %s148 = smul.addr %s147, 8
        %s149 = smul.addr %s148, 8
        %s150 = scalar_lea.vmem %s0, %s149
        %p151 = pneg %p38
        %p152 = pneg %p35
        %p153 = pneg %p59
        %p154 = pneg %p56
        %p155 = pneg %p80
        %p156 = pneg %p77
        %p157 = pneg %p106
        %p158 = pneg %p103
        %s159 = sand.u32 %s93, 1
        %s160 = scalar_lea.sflag [#allocation3], %s159
        %s161 = sand.u32 %s93, 1
        %s162 = smul.addr %s161, 64
        %s163 = scalar_lea.vmem [#allocation2], %s162
        %p164 = scmp.lt.s32.totalorder %s17, 1
        %s165 = scalar_select %p164, %s17, 1
        %s166 = smul.addr %s165, 8
        %s167 = smul.addr %s166, 8
        %s168 = scalar_lea.vmem %s0, %s167
        %v169 = vld [vmem:[%s168] sm:$0xff]
        %v170 = vld [vmem:[%s168 + $0x8] sm:$0xff]
        %v171 = vld [vmem:[%s168 + $0x10] sm:$0xff]
        %v172 = vld [vmem:[%s168 + $0x18] sm:$0xff]
        %v173 = vld [vmem:[%s168 + $0x20] sm:$0xff]
        %v174 = vld [vmem:[%s168 + $0x28] sm:$0xff]
        %v175 = vld [vmem:[%s168 + $0x30] sm:$0xff]
        %v176 = vld [vmem:[%s168 + $0x38] sm:$0xff]
        %vm177 = vcmask 523264
        %v178 = vsel %vm177, %v169, 0.0
        %179 = vadd.xlane.f32.xlu0 %v178
        %v180 = vpop.xlane.xlu0 %179
        %v181 = vsel %vm177, %v170, 0.0
        %182 = vadd.xlane.f32.xlu0 %v181
        %v183 = vpop.xlane.xlu0 %182
        %v184 = vsel %vm177, %v171, 0.0
        %185 = vadd.xlane.f32.xlu0 %v184
        %v186 = vpop.xlane.xlu0 %185
        %v187 = vsel %vm177, %v172, 0.0
        %188 = vadd.xlane.f32.xlu0 %v187
        %v189 = vpop.xlane.xlu0 %188
        %v190 = vsel %vm177, %v173, 0.0
        %191 = vadd.xlane.f32.xlu0 %v190
        %v192 = vpop.xlane.xlu0 %191
        %v193 = vsel %vm177, %v174, 0.0
        %194 = vadd.xlane.f32.xlu0 %v193
        %v195 = vpop.xlane.xlu0 %194
        %v196 = vsel %vm177, %v175, 0.0
        %197 = vadd.xlane.f32.xlu0 %v196
        %v198 = vpop.xlane.xlu0 %197
        %v199 = vsel %vm177, %v176, 0.0
        %200 = vadd.xlane.f32.xlu0 %v199
        %v201 = vpop.xlane.xlu0 %200
        %v202 = vmul.f32 %v180, 0.015625
        %v203 = vmul.f32 %v183, 0.015625
        %v204 = vmul.f32 %v186, 0.015625
        %v205 = vmul.f32 %v189, 0.015625
        %v206 = vmul.f32 %v192, 0.015625
        %v207 = vmul.f32 %v195, 0.015625
        %v208 = vmul.f32 %v198, 0.015625
        %v209 = vmul.f32 %v201, 0.015625
        %v210 = vld [vmem:[%s1] sm:$0xff]
        %v211 = vld [vmem:[%s1 + $0x8] sm:$0xff]
        %v212 = vld [vmem:[%s1 + $0x10] sm:$0xff]
        %v213 = vld [vmem:[%s1 + $0x18] sm:$0xff]
        %v214 = vld [vmem:[%s1 + $0x20] sm:$0xff]
        %v215 = vld [vmem:[%s1 + $0x28] sm:$0xff]
        %v216 = vld [vmem:[%s1 + $0x30] sm:$0xff]
        %v217 = vld [vmem:[%s1 + $0x38] sm:$0xff]
        %v226 = vlaneseq
        %v227 = vand.u32 %v226, 127
        %v228 = vlaneseq
        %v229 = vshrl.u32 %v228, 7
        %v230 = vsub.s32 %v227, %v229
        %v231 = vrot.slane %v202, %v230
        %v232 = vadd.s32 %v227, 4294967288
        %v233 = vlaneseq
        %v234 = vshrl.u32 %v233, 7
        %v235 = vsub.s32 %v232, %v234
        %v236 = vrot.slane %v203, %v235
        %vm237 = vcmask 130112
        %v238 = vsel %vm237, %v236, %v231
        %v239 = vadd.s32 %v227, 4294967280
        %v240 = vlaneseq
        %v241 = vshrl.u32 %v240, 7
        %v242 = vsub.s32 %v239, %v241
        %v243 = vrot.slane %v204, %v242
        %vm244 = vcmask 195712
        %v245 = vsel %vm244, %v243, %v238
        %v246 = vadd.s32 %v227, 4294967272
        %v247 = vlaneseq
        %v248 = vshrl.u32 %v247, 7
        %v249 = vsub.s32 %v246, %v248
        %v250 = vrot.slane %v205, %v249
        %vm251 = vcmask 261312
        %v252 = vsel %vm251, %v250, %v245
        %v253 = vadd.s32 %v227, 4294967264
        %v254 = vlaneseq
        %v255 = vshrl.u32 %v254, 7
        %v256 = vsub.s32 %v253, %v255
        %v257 = vrot.slane %v206, %v256
        %vm258 = vcmask 326912
        %v259 = vsel %vm258, %v257, %v252
        %v260 = vadd.s32 %v227, 4294967256
        %v261 = vlaneseq
        %v262 = vshrl.u32 %v261, 7
        %v263 = vsub.s32 %v260, %v262
        %v264 = vrot.slane %v207, %v263
        %vm265 = vcmask 392512
        %v266 = vsel %vm265, %v264, %v259
        %v267 = vadd.s32 %v227, 4294967248
        %v268 = vlaneseq
        %v269 = vshrl.u32 %v268, 7
        %v270 = vsub.s32 %v267, %v269
        %v271 = vrot.slane %v208, %v270
        %vm272 = vcmask 458112
        %v273 = vsel %vm272, %v271, %v266
        %v274 = vadd.s32 %v227, 4294967240
        %v275 = vlaneseq
        %v276 = vshrl.u32 %v275, 7
        %v277 = vsub.s32 %v274, %v276
        %v278 = vrot.slane %v209, %v277
        %vm279 = vcmask 523712
        %v280 = vsel %vm279, %v278, %v273
        %v281 = vsel %vm177, %v280, 0
        %283 = vmatprep.subr.mxu0 0.0
        %284 = vmatpush1.msra.mxu0 %v210
        %285 = vmatprep.subr.mxu0 0.0
        %286 = vmatpush1.msra.mxu0 %v211
        %287 = vmatprep.subr.mxu0 0.0
        %288 = vmatpush1.msra.mxu0 %v212
        %289 = vmatprep.subr.mxu0 0.0
        %290 = vmatpush1.msra.mxu0 %v213
        %291 = vmatprep.subr.mxu0 0.0
        %292 = vmatpush1.msra.mxu0 %v214
        %293 = vmatprep.subr.mxu0 0.0
        %294 = vmatpush1.msra.mxu0 %v215
        %295 = vmatprep.subr.mxu0 0.0
        %296 = vmatpush1.msra.mxu0 %v216
        %297 = vmatprep.subr.mxu0 0.0
        %298 = vmatpush1.msra.mxu0 %v217
        %299 = vmatprep.subr.mxu0 0.0
        %300 = vmatpush1.msra.mxu0 0.0
        %301 = vmatprep.subr.mxu0 0.0
        %302 = vmatpush1.msra.mxu0 0.0
        %303 = vmatprep.subr.mxu0 0.0
        %304 = vmatpush1.msra.mxu0 0.0
        %305 = vmatprep.subr.mxu0 0.0
        %306 = vmatpush1.msra.mxu0 0.0
        %307 = vmatprep.subr.mxu0 0.0
        %308 = vmatpush1.msra.mxu0 0.0
        %309 = vmatprep.subr.mxu0 0.0
        %310 = vmatpush1.msra.mxu0 0.0
        %311 = vmatprep.subr.mxu0 0.0
        %312 = vmatpush1.msra.mxu0 0.0
        %313 = vmatprep.subr.mxu0 0.0
        %314 = vmatpush1.msra.mxu0 0.0
        %315 = vmatprep.subr.mxu0 0.0
        %316 = vmatpush1.msra.mxu0 0.0
        %317 = vmatprep.subr.mxu0 0.0
        %318 = vmatpush1.msra.mxu0 0.0
        %319 = vmatprep.subr.mxu0 0.0
        %320 = vmatpush1.msra.mxu0 0.0
        %321 = vmatprep.subr.mxu0 0.0
        %322 = vmatpush1.msra.mxu0 0.0
        %323 = vmatprep.subr.mxu0 0.0
        %324 = vmatpush1.msra.mxu0 0.0
        %325 = vmatprep.subr.mxu0 0.0
        %326 = vmatpush1.msra.mxu0 0.0
        %327 = vmatprep.subr.mxu0 0.0
        %328 = vmatpush1.msra.mxu0 0.0
        %329 = vmatprep.subr.mxu0 0.0
        %330 = vmatpush1.msra.mxu0 0.0
        %331 = vmatprep.subr.mxu0 0.0
        %332 = vmatpush1.msra.mxu0 0.0
        %333 = vmatprep.subr.mxu0 0.0
        %334 = vmatpush1.msra.mxu0 0.0
        %335 = vmatprep.subr.mxu0 0.0
        %336 = vmatpush1.msra.mxu0 0.0
        %337 = vmatprep.subr.mxu0 0.0
        %338 = vmatpush1.msra.mxu0 0.0
        %339 = vmatprep.subr.mxu0 0.0
        %340 = vmatpush1.msra.mxu0 0.0
        %341 = vmatprep.subr.mxu0 0.0
        %342 = vmatpush1.msra.mxu0 0.0
        %343 = vmatprep.subr.mxu0 0.0
        %344 = vmatpush1.msra.mxu0 0.0
        %345 = vmatprep.subr.mxu0 0.0
        %346 = vmatpush1.msra.mxu0 0.0
        %347 = vmatprep.mubr.f32.mxu0 0.0
        %348 = vmatmul.mubr.f32.gmra.mrb[0].mxu0 %v281
        %v349 = vpop.f32.mrb[0].mxu0
        %v350 = vadd.f32 0.0, %v349
        %v351 = vpop.f32.mrb[0].mxu0
        %352 = vdwg.mxu0
        %v353 = vmax.f32 %v350, 0.0
        %v354 = vld [vmem:[%s2] sm:$0xff]
        %v355 = vld [vmem:[%s2 + $0x8] sm:$0xff]
        %v356 = vld [vmem:[%s2 + $0x10] sm:$0xff]
        %v357 = vld [vmem:[%s2 + $0x18] sm:$0xff]
        %v358 = vld [vmem:[%s2 + $0x20] sm:$0xff]
        %v359 = vld [vmem:[%s2 + $0x28] sm:$0xff]
        %v360 = vld [vmem:[%s2 + $0x30] sm:$0xff]
        %v361 = vld [vmem:[%s2 + $0x38] sm:$0xff]
        %v362 = vlaneseq
        %v363 = vshrl.u32 %v362, 7
        %v364 = vsub.s32 0, %v363
        %v365 = vrot.slane %v353, %v364
        %v366 = vmul.f32 %v365, %v354
        %v367 = vmul.f32 %v365, %v355
        %v368 = vmul.f32 %v365, %v356
        %v369 = vmul.f32 %v365, %v357
        %v370 = vmul.f32 %v365, %v358
        %v371 = vmul.f32 %v365, %v359
        %v372 = vmul.f32 %v365, %v360
        %v373 = vmul.f32 %v365, %v361
        %vm374 = vcmask 31744
        %v375 = vsel %vm374, %v366, 0.0
        %376 = vadd.xlane.f32.xlu0 %v375
        %v377 = vpop.xlane.xlu0 %376
        %v378 = vsel %vm374, %v367, 0.0
        %379 = vadd.xlane.f32.xlu0 %v378
        %v380 = vpop.xlane.xlu0 %379
        %v381 = vsel %vm374, %v368, 0.0
        %382 = vadd.xlane.f32.xlu0 %v381
        %v383 = vpop.xlane.xlu0 %382
        %v384 = vsel %vm374, %v369, 0.0
        %385 = vadd.xlane.f32.xlu0 %v384
        %v386 = vpop.xlane.xlu0 %385
        %v387 = vsel %vm374, %v370, 0.0
        %388 = vadd.xlane.f32.xlu0 %v387
        %v389 = vpop.xlane.xlu0 %388
        %v390 = vsel %vm374, %v371, 0.0
        %391 = vadd.xlane.f32.xlu0 %v390
        %v392 = vpop.xlane.xlu0 %391
        %v393 = vsel %vm374, %v372, 0.0
        %394 = vadd.xlane.f32.xlu0 %v393
        %v395 = vpop.xlane.xlu0 %394
        %v396 = vsel %vm374, %v373, 0.0
        %397 = vadd.xlane.f32.xlu0 %v396
        %v398 = vpop.xlane.xlu0 %397
        %v399 = vxor.u32 %v377, 2147483648
        %v400 = vxor.u32 %v380, 2147483648
        %v401 = vxor.u32 %v383, 2147483648
        %v402 = vxor.u32 %v386, 2147483648
        %v403 = vxor.u32 %v389, 2147483648
        %v404 = vxor.u32 %v392, 2147483648
        %v405 = vxor.u32 %v395, 2147483648
        %v406 = vxor.u32 %v398, 2147483648
        %v407 = vmul.f32 %v399, 1.442695
        %v408 = vpow.pop %v407
        %v409 = vmul.f32 %v400, 1.442695
        %v410 = vpow.pop %v409
        %v411 = vmul.f32 %v401, 1.442695
        %v412 = vpow.pop %v411
        %v413 = vmul.f32 %v402, 1.442695
        %v414 = vpow.pop %v413
        %v415 = vmul.f32 %v403, 1.442695
        %v416 = vpow.pop %v415
        %v417 = vmul.f32 %v404, 1.442695
        %v418 = vpow.pop %v417
        %v419 = vmul.f32 %v405, 1.442695
        %v420 = vpow.pop %v419
        %v421 = vmul.f32 %v406, 1.442695
        %v422 = vpow.pop %v421
        %v423 = vadd.f32 %v408, 1.0
        %v424 = vadd.f32 %v410, 1.0
        %v425 = vadd.f32 %v412, 1.0
        %v426 = vadd.f32 %v414, 1.0
        %v427 = vadd.f32 %v416, 1.0
        %v428 = vadd.f32 %v418, 1.0
        %v429 = vadd.f32 %v420, 1.0
        %v430 = vadd.f32 %v422, 1.0
        %v431 = vrcp.pop %v423
        %v432 = vmul.f32 1.0, %v431
        %v433 = vrcp.pop %v424
        %v434 = vmul.f32 1.0, %v433
        %v435 = vrcp.pop %v425
        %v436 = vmul.f32 1.0, %v435
        %v437 = vrcp.pop %v426
        %v438 = vmul.f32 1.0, %v437
        %v439 = vrcp.pop %v427
        %v440 = vmul.f32 1.0, %v439
        %v441 = vrcp.pop %v428
        %v442 = vmul.f32 1.0, %v441
        %v443 = vrcp.pop %v429
        %v444 = vmul.f32 1.0, %v443
        %v445 = vrcp.pop %v430
        %v446 = vmul.f32 1.0, %v445
        %v447 = vmul.f32 %v169, %v432
        %v448 = vmul.f32 %v170, %v434
        %v449 = vmul.f32 %v171, %v436
        %v450 = vmul.f32 %v172, %v438
        %v451 = vmul.f32 %v173, %v440
        %v452 = vmul.f32 %v174, %v442
        %v453 = vmul.f32 %v175, %v444
        %v454 = vmul.f32 %v176, %v446
        %455 = vst.msk [vmem:[%s163] sm:$0xff] %vm177, %v447
        %456 = vst.msk [vmem:[%s163 + $0x8] sm:$0xff] %vm177, %v448
        %457 = vst.msk [vmem:[%s163 + $0x10] sm:$0xff] %vm177, %v449
        %458 = vst.msk [vmem:[%s163 + $0x18] sm:$0xff] %vm177, %v450
        %459 = vst.msk [vmem:[%s163 + $0x20] sm:$0xff] %vm177, %v451
        %460 = vst.msk [vmem:[%s163 + $0x28] sm:$0xff] %vm177, %v452
        %461 = vst.msk [vmem:[%s163 + $0x30] sm:$0xff] %vm177, %v453
        %462 = vst.msk [vmem:[%s163 + $0x38] sm:$0xff] %vm177, %v454
        %s463 = sand.u32 %s93, 1
        %s464 = scalar_lea.sflag [#allocation3], %s463
        %s465 = sand.u32 %s93, 1
        %s466 = smul.addr %s465, 64
        %s467 = scalar_lea.vmem [#allocation2], %s466
        // Predicated region
        $region33: #{tpu_custom_call.1} parent=31 // pred_check
          %p468 = pneg %p103
        $region34: #{tpu_custom_call.1} parent=31 // pred_check_branch
          %470 = sbr.rel (%p468) target = $region36
        $region35: #{tpu_custom_call.1} parent=31 // pred_region
          %s472 = ssub.s32 1024, 1024
          %473 = vsyncadd %s464, %s472
          %s474 = smul.addr %s17, 8
          %s475 = smul.addr %s474, 128
          %s476 = scalar_lea.hbm %s3, %s475
          %s477 = sshll.u32 %s467, 4
          %s478 = int_to_ptr.vmem [resolvable:$true] %s477
          %483 = dma.vmem_to_hbm [thread:$0]  %s478, 1024, %s476, %s464, 128, 128, 8
        $region36: #{tpu_custom_call.1} parent=31 // pred_fallthru
          _
      $region32: #{tpu_custom_call.1} parent=5 // pred_fallthru
        _
      %p484 = scmp.le.s32.totalorder 2, %s12
      // Predicated region
      $region37: #{tpu_custom_call.1} parent=5 // pred_check
        %p485 = pneg %p484
      $region38: #{tpu_custom_call.1} parent=5 // pred_check_branch
        %487 = sbr.rel (%p485) target = $region40
      $region39: #{tpu_custom_call.1} parent=5 // pred_region
        %s488 = ssub.s32 %s12, 2
        // Predicated region
        $region41: #{tpu_custom_call.1} parent=39 // pred_check
          %p489 = pneg %p109
        $region42: #{tpu_custom_call.1} parent=39 // pred_check_branch
          %491 = sbr.rel (%p489) target = $region44
        $region43: #{tpu_custom_call.1} parent=39 // pred_region
          %s492 = sand.u32 %s94, 1
          %s493 = scalar_lea.sflag [#allocation3], %s492
          %s494 = sand.u32 %s94, 1
          %s495 = smul.addr %s494, 64
          %s496 = scalar_lea.vmem [#allocation2], %s495
          %497 = dma.done %s493, 1024
        $region44: #{tpu_custom_call.1} parent=39 // pred_fallthru
          _
      $region40: #{tpu_custom_call.1} parent=5 // pred_fallthru
        _
    $region6: #{tpu_custom_call.1} parent=1 // loop_footer
      %s16 = sadd.s32 1, %s12
    $region7: #{tpu_custom_call.1} parent=1 // loop_footer_branch
      %11 = sbr.rel target = $region3
    $region8: #{tpu_custom_call.1} parent=1 // loop_exit
      _
    %498 = vsyncpa [#allocation3], 1
    %s499 = scalar_lea.sflag [#allocation3], 1
    %500 = vsyncpa %s499, 1

</llo_original>
